<compile_context>
chip_gen: v5e
topology: v5e:2x2
jax: 0.10.0
libtpu: 0.0.40
codegen_flags: <defaults>
</compile_context>

<pallas_src>
import math
import functools

import jax
import jax.numpy as jnp
from jax.experimental import pallas as pl
from jax.experimental.pallas import tpu as pltpu


def _build_pe(max_seq_len: int, d_model: int) -> jnp.ndarray:
    """Reproduce the PyTorch __init__ pe table exactly (2*i / 2*(i+1) exponents)."""
    assert d_model % 2 == 0, "d_model must be even (as required by the PyTorch loop)"
    pos = jnp.arange(max_seq_len, dtype=jnp.float32)[:, None]           # (S, 1)
    i_even = jnp.arange(0, d_model, 2, dtype=jnp.float32)[None, :]       # (1, D/2) -> i
    denom_sin = jnp.power(10000.0, 2.0 * i_even / d_model)               # 10000**(2*i/d_model)
    denom_cos = jnp.power(10000.0, 2.0 * (i_even + 1.0) / d_model)       # 10000**(2*(i+1)/d_model)
    pe_sin = jnp.sin(pos / denom_sin)                                     # (S, D/2)
    pe_cos = jnp.cos(pos / denom_cos)                                     # (S, D/2)
    pe = jnp.zeros((max_seq_len, d_model), dtype=jnp.float32)
    pe = pe.at[:, 0::2].set(pe_sin)
    pe = pe.at[:, 1::2].set(pe_cos)
    return pe[None, :, :]                                                 # (1, S, D)


def _pos_enc_kernel(x_ref, pe_ref, o_ref, *, scale):
    # o = scale * x + pe ; pe block is (1, tile_c) and broadcasts over the batch sublanes.
    o_ref[...] = scale * x_ref[...] + pe_ref[...]


def _choose_col_tile(n_cols: int, n_rows: int, dtype_bytes: int,
                     block_budget_bytes: int = 2 * 1024 * 1024) -> int:
    """Largest multiple-of-128 divisor of n_cols whose (n_rows x tile) block fits the budget.

    Lane-dense (multiple of 128) last dim -> unmasked vector stores; ~2 MiB blocks keep
    2 (double-buffer) x 3 refs x block comfortably inside scoped VMEM on v5e/v6e/v7x.
    """
    if n_cols % 128 != 0:
        # Fall back: block equals the full last dim (always a legal BlockSpec).
        return n_cols
    max_cols = max(128, block_budget_bytes // max(1, n_rows * dtype_bytes))
    m = n_cols // 128
    best = 128
    for k in range(1, m + 1):
        if m % k == 0 and 128 * k <= max_cols:
            best = 128 * k
    return best


def positional_encoder(x: jnp.ndarray, pe: jnp.ndarray, d_model: int) -> jnp.ndarray:
    """x: (B, S, D), pe: (1, max_seq_len, D) with max_seq_len >= S -> (B, S, D)."""
    B, S, D = x.shape
    assert pe.shape[0] == 1 and pe.shape[2] == D and pe.shape[1] >= S
    pe = pe[:, :S, :]                        # slice to the actual sequence length
    scale = math.sqrt(d_model)

    # Flatten to 2-D so the last (lane) dim can be tiled in 128-multiples
    # independently of d_model, and the batch broadcast stays a sublane broadcast.
    N = S * D
    x2 = x.reshape(B, N)
    pe2 = pe.reshape(1, N)

    dtype_bytes = jnp.dtype(x.dtype).itemsize
    tile_c = _choose_col_tile(N, B, dtype_bytes)
    grid = (N // tile_c,)

    kernel = functools.partial(_pos_enc_kernel, scale=scale)

    out2 = pl.pallas_call(
        kernel,
        out_shape=jax.ShapeDtypeStruct((B, N), x.dtype),
        grid_spec=pltpu.PrefetchScalarGridSpec(
            num_scalar_prefetch=0,
            grid=grid,
            in_specs=[
                # x: full batch rows, lane-dense column tile.
                pl.BlockSpec((B, tile_c), lambda c: (0, c)),
                # pe: one row, same column tile -> fetched once per tile, broadcast in-kernel.
                pl.BlockSpec((1, tile_c), lambda c: (0, c)),
            ],
            out_specs=pl.BlockSpec((B, tile_c), lambda c: (0, c)),
        ),
        compiler_params=pltpu.CompilerParams(
            # Single parallel axis: v7x megacore shards the column-tile loop across
            # both TensorCores; harmless (1 TC) on v5e/v6e.
            dimension_semantics=("parallel",),
            # 2 buffers x (x + pe + out) blocks at ~2 MiB/block << 32 MiB on every gen;
            # raised explicitly because v5e's default scoped VMEM is only 16 MiB.
            vmem_limit_bytes=32 * 1024 * 1024,
        ),
    )(x2, pe2)

    return out2.reshape(B, S, D)


if __name__ == "__main__":
    # Small shapes consistent with the module's forward:
    # batch=2, seq=8 (== max_seq_len), d_model=32.
    B, S, D = 2, 8, 32

    key = jax.random.PRNGKey(0)
    x = jax.random.normal(key, (B, S, D), dtype=jnp.float32)

    pe = _build_pe(max_seq_len=S, d_model=D)

    out = positional_encoder(x, pe, d_model=D)
    out = jax.block_until_ready(out)

    # Reference check in plain JAX (same math as the PyTorch forward).
    ref = math.sqrt(D) * x + pe
    assert out.shape == (B, S, D)
    assert jnp.allclose(out, ref, atol=1e-5, rtol=1e-5)

    print("KERNEL_OK")
</pallas_src>

<mosaic_0001>
module attributes {stable_mosaic.version = 11 : i64} {
  func.func @_pos_enc_kernel(%arg0: i32, %arg1: memref<2x256xf32, #tpu.memory_space<vmem>>, %arg2: memref<1x256xf32, #tpu.memory_space<vmem>>, %arg3: memref<2x256xf32, #tpu.memory_space<vmem>>) attributes {dimension_semantics = [#tpu.dimension_semantics<parallel>], iteration_bounds = array<i64: 1>, scalar_prefetch = 0 : i64, scratch_operands = 0 : i64, tpu.core_type = #tpu.core_type<tc>, window_params = [{transform_indices = @transform_0, window_bounds = array<i64: 2, 256>}, {transform_indices = @transform_1, window_bounds = array<i64: 1, 256>}, {transform_indices = @transform_2, window_bounds = array<i64: 2, 256>}]} {
    %c0 = arith.constant 0 : index
    %c0_0 = arith.constant 0 : index
    %0 = vector.load %arg1[%c0, %c0_0] : memref<2x256xf32, #tpu.memory_space<vmem>>, vector<2x256xf32>
    %cst = arith.constant 5.65685415 : f32
    %1 = vector.broadcast %cst : f32 to vector<2x256xf32>
    %2 = arith.mulf %1, %0 : vector<2x256xf32>
    %c0_1 = arith.constant 0 : index
    %c0_2 = arith.constant 0 : index
    %3 = vector.load %arg2[%c0_1, %c0_2] : memref<1x256xf32, #tpu.memory_space<vmem>>, vector<1x256xf32>
    %4 = vector.broadcast %3 : vector<1x256xf32> to vector<2x256xf32>
    %5 = arith.addf %2, %4 : vector<2x256xf32>
    %c0_3 = arith.constant 0 : index
    %c0_4 = arith.constant 0 : index
    %6 = vector.load %arg3[%c0_3, %c0_4] : memref<2x256xf32, #tpu.memory_space<vmem>>, vector<2x256xf32>
    tpu.vector_store %arg3[%c0_3, %c0_4], %5 {strides = array<i32>} : memref<2x256xf32, #tpu.memory_space<vmem>>, vector<2x256xf32>,
    return
  }
  func.func @transform_0(%arg0: i32) -> (i32, i32) {
    %c0_i32 = arith.constant 0 : i32
    %c0_i32_0 = arith.constant 0 : i32
    return %c0_i32, %arg0 : i32, i32
  }
  func.func @transform_1(%arg0: i32) -> (i32, i32) {
    %c0_i32 = arith.constant 0 : i32
    %c0_i32_0 = arith.constant 0 : i32
    return %c0_i32, %arg0 : i32, i32
  }
  func.func @transform_2(%arg0: i32) -> (i32, i32) {
    %c0_i32 = arith.constant 0 : i32
    %c0_i32_0 = arith.constant 0 : i32
    return %c0_i32, %arg0 : i32, i32
  }
}

</mosaic_0001>

<llo_original>
// kernel: tpu_custom_call.1
$region0: #{tpu_custom_call.1}
  #allocation0 [shape = 'u32[]', space=smem, size = 0x4, offset = 0x4, fixed_abs, tag = 'smem constant byte address 0x4 - core index']
  #allocation1 [shape = 'u32[72,128]{1,0:T(1,128)}', space=vmem, size = 0x9000, scoped, tag = 'internal scratch']
  %s0 = inlined_call_operand.hbm [shape: f32[2,256], index: 0, kind: input, shape index: {}]
  %s1 = inlined_call_operand.hbm [shape: f32[1,256], index: 1, kind: input, shape index: {}]
  %s2 = inlined_call_operand.hbm [shape: f32[2,256], index: 2, kind: output, shape index: {}]
  %s3 = sld [smem:[#allocation0]]
  $region26: #{tpu_custom_call.1} parent=0
    _
  %s5 = ssub.s32 1, %s3
  %s6 = scalar_select 0, %s5, %s3
  $region1: #{tpu_custom_call.1} parent=0
    #allocation2 [shape = 'u8[2048]{0}', space=vmem, size = 0x800, scoped, tag = 'input window, operand 0, single buffered']
    #allocation3 [shape = 's32[1]{0}', space=sflag, size = 0x4, scoped, tag = 'scoped memory for tpu_custom_call.1']
    #allocation4 [shape = 's32[1]{0}', space=sflag, size = 0x4, scoped, tag = 'scoped memory for tpu_custom_call.1']
    #allocation5 [shape = 'u8[1024]{0}', space=vmem, size = 0x400, scoped, tag = 'input window, operand 1, single buffered']
    #allocation6 [shape = 's32[1]{0}', space=sflag, size = 0x4, scoped, tag = 'scoped memory for tpu_custom_call.1']
    #allocation7 [shape = 'u8[2048]{0}', space=vmem, size = 0x800, scoped, tag = 'output window, operand 0, single buffered']
    %7 = vsyncpa [#allocation3], 0
    %8 = vsyncpa [#allocation6], 0
    %9 = vsyncpa [#allocation4], 0
    // Predicated region
    $region2: #{tpu_custom_call.1} parent=1 // pred_check
      _
    $region3: #{tpu_custom_call.1} parent=1 // pred_check_branch
      %11 = sbr.rel (0) target = $region5
    $region4: #{tpu_custom_call.1} parent=1 // pred_region
      %13 = vsyncadd [#allocation3], 0
      %s15 = sshll.u32 %s0, 4
      %s16 = int_to_ptr.hbm [resolvable:$true] %s15
      %s17 = sshll.u32 [#allocation2], 4
      %s18 = int_to_ptr.vmem [resolvable:$true] %s17
      %20 = dma.hbm_to_vmem [thread:$0]  %s16, 64, %s18, [#allocation3]
    $region5: #{tpu_custom_call.1} parent=1 // pred_fallthru
      _
    // Predicated region
    $region6: #{tpu_custom_call.1} parent=1 // pred_check
      _
    $region7: #{tpu_custom_call.1} parent=1 // pred_check_branch
      %22 = sbr.rel (0) target = $region9
    $region8: #{tpu_custom_call.1} parent=1 // pred_region
      %24 = vsyncadd [#allocation6], 0
      %s26 = sshll.u32 %s1, 4
      %s27 = int_to_ptr.hbm [resolvable:$true] %s26
      %s28 = sshll.u32 [#allocation5], 4
      %s29 = int_to_ptr.vmem [resolvable:$true] %s28
      %31 = dma.hbm_to_vmem [thread:$0]  %s27, 32, %s29, [#allocation6]
    $region9: #{tpu_custom_call.1} parent=1 // pred_fallthru
      _
    // Predicated region
    $region10: #{tpu_custom_call.1} parent=1 // pred_check
      _
    $region11: #{tpu_custom_call.1} parent=1 // pred_check_branch
      %33 = sbr.rel (0) target = $region13
    $region12: #{tpu_custom_call.1} parent=1 // pred_region
      %35 = dma.done [#allocation3], 64
    $region13: #{tpu_custom_call.1} parent=1 // pred_fallthru
      _
    // Predicated region
    $region14: #{tpu_custom_call.1} parent=1 // pred_check
      _
    $region15: #{tpu_custom_call.1} parent=1 // pred_check_branch
      %37 = sbr.rel (0) target = $region17
    $region16: #{tpu_custom_call.1} parent=1 // pred_region
      %39 = dma.done [#allocation6], 32
    $region17: #{tpu_custom_call.1} parent=1 // pred_fallthru
      _
    %v40 = vld [vmem:[#allocation2] sm:$0xf]
    %v41 = vmul.f32 %v40, 5.656854
    %v42 = vld [vmem:[#allocation5] sm:$0x3]
    %v44 = vperm.slane %v42, 0
    %v45 = vperm.slane %v42, 1
    %v46 = vrot.slane %v45, 6
    %vm47 = vcmask 1041408
    %v48 = vsel %vm47, %v44, %v46
    %v50 = vadd.f32 %v41, %v48
    %51 = vst [vmem:[#allocation7] sm:$0xf] %v50
    // Predicated region
    $region18: #{tpu_custom_call.1} parent=1 // pred_check
      _
    $region19: #{tpu_custom_call.1} parent=1 // pred_check_branch
      %53 = sbr.rel (0) target = $region21
    $region20: #{tpu_custom_call.1} parent=1 // pred_region
      %55 = vsyncadd [#allocation4], 0
      %s57 = sshll.u32 [#allocation7], 4
      %s58 = int_to_ptr.vmem [resolvable:$true] %s57
      %s59 = sshll.u32 %s2, 4
      %s60 = int_to_ptr.hbm [resolvable:$true] %s59
      %62 = dma.vmem_to_hbm [thread:$0]  %s58, 64, %s60, [#allocation4]
    $region21: #{tpu_custom_call.1} parent=1 // pred_fallthru
      _
    // Predicated region
    $region22: #{tpu_custom_call.1} parent=1 // pred_check
      _
    $region23: #{tpu_custom_call.1} parent=1 // pred_check_branch
      %64 = sbr.rel (0) target = $region25
    $region24: #{tpu_custom_call.1} parent=1 // pred_region
      %66 = dma.done [#allocation4], 64
    $region25: #{tpu_custom_call.1} parent=1 // pred_fallthru
      _
    %67 = vsyncpa [#allocation3], 1
    %68 = vsyncpa [#allocation6], 1
    %69 = vsyncpa [#allocation4], 1

</llo_original>
